<compile_context>
chip_gen: v7x
topology: tpu7x:2x2x1
jax: 0.10.0
libtpu: 0.0.40
codegen_flags: <defaults>
</compile_context>

<pallas_src>
import functools
import math

import jax
import jax.numpy as jnp
from jax.experimental import pallas as pl
from jax.experimental.pallas import tpu as pltpu

MOVES = ["stay", "hit", "double", "split"]
OUTPUT_DIM = len(MOVES)  # 4

_LANE = 128
_SUBLANE = 8
_MIN_SPLIT_TILE = 1024   # only split the batch across tiles if each half is >= this


def _round_up(x, m):
    return ((x + m - 1) // m) * m


def _mlp_kernel(n_layers, *refs):
    """refs = (x_ref, w0, b0, w1, b1, ..., w_{L-1}, b_{L-1}, out_ref).

    Layers 0..L-2 are followed by ReLU; the last layer is linear (fc_output).
    Hidden-layer matmuls use bf16 MXU operands with f32 accumulation; the bias
    is folded into the f32 accumulator. The final (tiny, N=4) layer runs in f32
    to keep argmax-stable Q-values.
    """
    x_ref = refs[0]
    out_ref = refs[-1]
    param_refs = refs[1:-1]

    h = x_ref[...]  # bf16 input tile
    for l in range(n_layers):
        w_ref = param_refs[2 * l]
        b_ref = param_refs[2 * l + 1]   # f32 (1, out)
        if l < n_layers - 1:
            acc = b_ref[...] + jnp.dot(
                h.astype(jnp.bfloat16), w_ref[...],
                preferred_element_type=jnp.float32)
            h = jnp.maximum(acc, 0.0)   # ReLU (fc_input and fc_hidden layers)
        else:
            # fc_output: keep the tiny last matmul in f32.
            h = b_ref[...] + jnp.dot(
                h.astype(jnp.float32), w_ref[...],
                preferred_element_type=jnp.float32)
    out_ref[...] = h.astype(out_ref.dtype)


def reference_forward(x, params):
    """Plain-JAX f32 reference of Net.forward (also the small-batch fallback)."""
    h = x
    for i, (w, b) in enumerate(params):
        h = h @ w + b
        if i < len(params) - 1:
            h = jnp.maximum(h, 0.0)
    return h


def net_forward(x, params, *, batch_tile=2048, min_pallas_batch=64):
    """Run the Net forward pass in one batch-tiled Pallas kernel.

    x      : (B, input_dim) float32
    params : list of (W, b) with W:(in, out) f32, b:(1, out) f32
    returns: (B, OUTPUT_DIM) float32
    """
    n_layers = len(params)
    batch, input_dim = x.shape
    out_dim = params[-1][0].shape[1]

    # act()-sized batches: pallas_call launch + padding overhead exceeds the
    # compute; let XLA's fused dot chain handle it.
    if batch < min_pallas_batch:
        return reference_forward(x, params)

    # --- pad narrow feature dims (zero fill => numerically exact) ---
    dims = [input_dim] + [w.shape[1] for w, _ in params]
    pad_dims = [_round_up(input_dim, _SUBLANE)]
    pad_dims += [_round_up(d, _LANE) for d in dims[1:-1]]
    pad_dims += [out_dim]  # output stays at its native width (tiny HBM writeback)

    padded_params = []
    for l, (w, b) in enumerate(params):
        pin, pout = pad_dims[l], pad_dims[l + 1]
        w_p = jnp.zeros((pin, pout), jnp.float32).at[: w.shape[0], : w.shape[1]].set(w)
        b_p = jnp.zeros((1, pout), jnp.float32).at[:, : b.shape[1]].set(b)
        padded_params.append((w_p, b_p))

    # --- batch tiling (sublane-aligned); pad batch to a tile multiple ---
    b8 = _round_up(batch, _SUBLANE)
    tb = _round_up(min(batch_tile, b8), _SUBLANE)
    # v7x megacore: when the batch is large, make sure there are >= 2 grid steps
    # so the "parallel" axis can shard across both TensorCores. (On v5e/v6e this
    # only adds one ~0.35 us grid step — negligible at these sizes.)
    if b8 >= 2 * _MIN_SPLIT_TILE:
        tb = min(tb, max(_MIN_SPLIT_TILE, _round_up(pl.cdiv(b8, 2), _SUBLANE)))
    b_pad = _round_up(b8, tb)
    grid = (b_pad // tb,)

    # --- input: feature-pad, batch-pad, cast to bf16 once in the wrapper ---
    x_in = jnp.zeros((b_pad, pad_dims[0]), jnp.bfloat16)
    x_in = x_in.at[:batch, :input_dim].set(x.astype(jnp.bfloat16))

    # hidden-layer weights in bf16 (MXU-native); final layer + biases stay f32
    flat_params = []
    for l, (w_p, b_p) in enumerate(padded_params):
        w_dtype = jnp.bfloat16 if l < n_layers - 1 else jnp.float32
        flat_params.append(w_p.astype(w_dtype))
        flat_params.append(b_p)

    # --- specs ---
    in_specs = [pl.BlockSpec((tb, pad_dims[0]), lambda i: (i, 0))]
    for p in flat_params:
        in_specs.append(pl.BlockSpec(p.shape, lambda i: (0, 0)))
    out_specs = pl.BlockSpec((tb, out_dim), lambda i: (i, 0))

    # --- VMEM budget (double-buffered tiles + resident params + live acts) ---
    vmem_bytes = 2 * tb * pad_dims[0] * 2           # bf16 input tile, 2 buffers
    vmem_bytes += 2 * tb * out_dim * 4              # f32 output tile, 2 buffers
    for p in flat_params:
        vmem_bytes += 2 * int(p.size) * p.dtype.itemsize
    vmem_bytes += 4 * tb * max(pad_dims) * 4        # live activations headroom
    try:
        phys_vmem = int(getattr(pltpu.get_tpu_info(), "vmem_capacity_bytes",
                                64 << 20))
    except Exception:
        phys_vmem = 64 << 20                        # v7x-safe fallback
    vmem_limit = int(min(vmem_bytes + (8 << 20), (phys_vmem * 5) // 8))

    flops = 2 * b_pad * sum(pad_dims[i] * pad_dims[i + 1]
                            for i in range(len(pad_dims) - 1))
    bytes_accessed = (int(x_in.size) * 2
                      + sum(int(p.size) * p.dtype.itemsize for p in flat_params)
                      + b_pad * out_dim * 4)

    kernel = functools.partial(_mlp_kernel, n_layers)
    out_padded = pl.pallas_call(
        kernel,
        out_shape=jax.ShapeDtypeStruct((b_pad, out_dim), jnp.float32),
        grid=grid,
        in_specs=in_specs,
        out_specs=out_specs,
        compiler_params=pltpu.CompilerParams(
            dimension_semantics=("parallel",),
            vmem_limit_bytes=vmem_limit),
        cost_estimate=pl.CostEstimate(
            flops=flops, transcendentals=0, bytes_accessed=bytes_accessed),
    )(x_in, *flat_params)

    return out_padded[:batch, :]


def init_net_params(key, input_dim, hidden_layers):
    """Deterministic init matching nn.Linear's U(-1/sqrt(fan_in), 1/sqrt(fan_in))."""
    assert len(hidden_layers), "must have at least 1 hidden layer"
    dims = [input_dim] + list(hidden_layers) + [OUTPUT_DIM]
    params = []
    for i in range(len(dims) - 1):
        fan_in, fan_out = dims[i], dims[i + 1]
        key, kw, kb = jax.random.split(key, 3)
        bound = 1.0 / math.sqrt(fan_in)
        w = jax.random.uniform(kw, (fan_in, fan_out), jnp.float32, -bound, bound)
        b = jax.random.uniform(kb, (1, fan_out), jnp.float32, -bound, bound)
        params.append((w, b))
    return params


if __name__ == "__main__":
    key = jax.random.PRNGKey(0)

    # Shapes implied by the module's `act`: obs is (batch, 5); small hidden sizes.
    # Use a training-sized batch so the Pallas path (not the XLA fallback) runs.
    batch = 256
    input_dim = 5
    hidden_layers = [32, 32]

    key, kx = jax.random.split(key)
    x = jax.random.normal(kx, (batch, input_dim), jnp.float32)

    params = init_net_params(key, input_dim, hidden_layers)

    out = net_forward(x, params)
    out = jax.block_until_ready(out)

    ref = reference_forward(x, params)
    assert out.shape == (batch, OUTPUT_DIM), out.shape
    # bf16 hidden matmuls (f32 accumulation, f32 final layer) => small drift.
    assert jnp.allclose(out, ref, atol=3e-2, rtol=3e-2), "mismatch vs reference"

    # act()-sized batches take the plain-XLA fallback path (exact).
    small = jax.block_until_ready(net_forward(x[:4], params))
    assert jnp.allclose(small, ref[:4], atol=1e-5, rtol=1e-5), "fallback mismatch"

    # TODO(synk): `act`'s argmax/softmax sampling + NaN valid-move masking is
    # host-side glue, not part of the forward hot path, so it is not a kernel.
    print("KERNEL_OK")
</pallas_src>

<mosaic_0001>
module attributes {stable_mosaic.version = 11 : i64} {
  func.func @_mlp_kernel(%arg0: i32, %arg1: memref<256x8xbf16, #tpu.memory_space<vmem>>, %arg2: memref<8x128xbf16, #tpu.memory_space<vmem>>, %arg3: memref<1x128xf32, #tpu.memory_space<vmem>>, %arg4: memref<128x128xbf16, #tpu.memory_space<vmem>>, %arg5: memref<1x128xf32, #tpu.memory_space<vmem>>, %arg6: memref<128x4xf32, #tpu.memory_space<vmem>>, %arg7: memref<1x4xf32, #tpu.memory_space<vmem>>, %arg8: memref<256x4xf32, #tpu.memory_space<vmem>>) attributes {dimension_semantics = [#tpu.dimension_semantics<parallel>], iteration_bounds = array<i64: 1>, scalar_prefetch = 0 : i64, scratch_operands = 0 : i64, tpu.core_type = #tpu.core_type<tc>, window_params = [{transform_indices = @transform_0, window_bounds = array<i64: 256, 8>}, {pipeline_mode = #tpu.pipeline_mode<synchronous>, transform_indices = @transform_1, window_bounds = array<i64: 8, 128>}, {pipeline_mode = #tpu.pipeline_mode<synchronous>, transform_indices = @transform_2, window_bounds = array<i64: 1, 128>}, {pipeline_mode = #tpu.pipeline_mode<synchronous>, transform_indices = @transform_3, window_bounds = array<i64: 128, 128>}, {pipeline_mode = #tpu.pipeline_mode<synchronous>, transform_indices = @transform_4, window_bounds = array<i64: 1, 128>}, {pipeline_mode = #tpu.pipeline_mode<synchronous>, transform_indices = @transform_5, window_bounds = array<i64: 128, 4>}, {pipeline_mode = #tpu.pipeline_mode<synchronous>, transform_indices = @transform_6, window_bounds = array<i64: 1, 4>}, {transform_indices = @transform_7, window_bounds = array<i64: 256, 4>}]} {
    %c0 = arith.constant 0 : index
    %c0_0 = arith.constant 0 : index
    %0 = vector.load %arg1[%c0, %c0_0] : memref<256x8xbf16, #tpu.memory_space<vmem>>, vector<256x8xbf16>
    %c0_1 = arith.constant 0 : index
    %c0_2 = arith.constant 0 : index
    %1 = vector.load %arg3[%c0_1, %c0_2] : memref<1x128xf32, #tpu.memory_space<vmem>>, vector<1x128xf32>
    %c0_3 = arith.constant 0 : index
    %c0_4 = arith.constant 0 : index
    %2 = vector.load %arg2[%c0_3, %c0_4] : memref<8x128xbf16, #tpu.memory_space<vmem>>, vector<8x128xbf16>
    %cst = arith.constant dense<0.000000e+00> : vector<256x128xf32>
    %3 = tpu.matmul %0, %2, %cst {dimension_numbers = #tpu.dot_dimension_numbers<[1], [0], [0], [1], [0, 0, 1, 1], [], []>} : vector<256x8xbf16>, vector<8x128xbf16>, vector<256x128xf32> -> vector<256x128xf32>
    %4 = vector.broadcast %1 : vector<1x128xf32> to vector<256x128xf32>
    %5 = arith.addf %4, %3 : vector<256x128xf32>
    %cst_5 = arith.constant 0.000000e+00 : f32
    %6 = vector.broadcast %cst_5 : f32 to vector<256x128xf32>
    %7 = arith.maximumf %5, %6 : vector<256x128xf32>
    %c0_6 = arith.constant 0 : index
    %c0_7 = arith.constant 0 : index
    %8 = vector.load %arg5[%c0_6, %c0_7] : memref<1x128xf32, #tpu.memory_space<vmem>>, vector<1x128xf32>
    %9 = arith.truncf %7 : vector<256x128xf32> to vector<256x128xbf16>
    %c0_8 = arith.constant 0 : index
    %c0_9 = arith.constant 0 : index
    %10 = vector.load %arg4[%c0_8, %c0_9] : memref<128x128xbf16, #tpu.memory_space<vmem>>, vector<128x128xbf16>
    %cst_10 = arith.constant dense<0.000000e+00> : vector<256x128xf32>
    %11 = tpu.matmul %9, %10, %cst_10 {dimension_numbers = #tpu.dot_dimension_numbers<[1], [0], [0], [1], [0, 0, 1, 1], [], []>} : vector<256x128xbf16>, vector<128x128xbf16>, vector<256x128xf32> -> vector<256x128xf32>
    %12 = vector.broadcast %8 : vector<1x128xf32> to vector<256x128xf32>
    %13 = arith.addf %12, %11 : vector<256x128xf32>
    %cst_11 = arith.constant 0.000000e+00 : f32
    %14 = vector.broadcast %cst_11 : f32 to vector<256x128xf32>
    %15 = arith.maximumf %13, %14 : vector<256x128xf32>
    %c0_12 = arith.constant 0 : index
    %c0_13 = arith.constant 0 : index
    %16 = vector.load %arg7[%c0_12, %c0_13] : memref<1x4xf32, #tpu.memory_space<vmem>>, vector<1x4xf32>
    %c0_14 = arith.constant 0 : index
    %c0_15 = arith.constant 0 : index
    %17 = vector.load %arg6[%c0_14, %c0_15] : memref<128x4xf32, #tpu.memory_space<vmem>>, vector<128x4xf32>
    %cst_16 = arith.constant dense<0.000000e+00> : vector<256x4xf32>
    %18 = tpu.matmul %15, %17, %cst_16 {dimension_numbers = #tpu.dot_dimension_numbers<[1], [0], [0], [1], [0, 0, 1, 1], [], []>} : vector<256x128xf32>, vector<128x4xf32>, vector<256x4xf32> -> vector<256x4xf32>
    %19 = vector.broadcast %16 : vector<1x4xf32> to vector<256x4xf32>
    %20 = arith.addf %19, %18 : vector<256x4xf32>
    %c0_17 = arith.constant 0 : index
    %c0_18 = arith.constant 0 : index
    %21 = vector.load %arg8[%c0_17, %c0_18] : memref<256x4xf32, #tpu.memory_space<vmem>>, vector<256x4xf32>
    tpu.vector_store %arg8[%c0_17, %c0_18], %20 {strides = array<i32>} : memref<256x4xf32, #tpu.memory_space<vmem>>, vector<256x4xf32>,
    return
  }
  func.func @transform_0(%arg0: i32) -> (i32, i32) {
    %c0_i32 = arith.constant 0 : i32
    %c0_i32_0 = arith.constant 0 : i32
    return %arg0, %c0_i32 : i32, i32
  }
  func.func @transform_1(%arg0: i32) -> (i32, i32) {
    %c0_i32 = arith.constant 0 : i32
    %c0_i32_0 = arith.constant 0 : i32
    %c0_i32_1 = arith.constant 0 : i32
    return %c0_i32, %c0_i32_0 : i32, i32
  }
  func.func @transform_2(%arg0: i32) -> (i32, i32) {
    %c0_i32 = arith.constant 0 : i32
    %c0_i32_0 = arith.constant 0 : i32
    %c0_i32_1 = arith.constant 0 : i32
    return %c0_i32, %c0_i32_0 : i32, i32
  }
  func.func @transform_3(%arg0: i32) -> (i32, i32) {
    %c0_i32 = arith.constant 0 : i32
    %c0_i32_0 = arith.constant 0 : i32
    %c0_i32_1 = arith.constant 0 : i32
    return %c0_i32, %c0_i32_0 : i32, i32
  }
  func.func @transform_4(%arg0: i32) -> (i32, i32) {
    %c0_i32 = arith.constant 0 : i32
    %c0_i32_0 = arith.constant 0 : i32
    %c0_i32_1 = arith.constant 0 : i32
    return %c0_i32, %c0_i32_0 : i32, i32
  }
  func.func @transform_5(%arg0: i32) -> (i32, i32) {
    %c0_i32 = arith.constant 0 : i32
    %c0_i32_0 = arith.constant 0 : i32
    %c0_i32_1 = arith.constant 0 : i32
    return %c0_i32, %c0_i32_0 : i32, i32
  }
  func.func @transform_6(%arg0: i32) -> (i32, i32) {
    %c0_i32 = arith.constant 0 : i32
    %c0_i32_0 = arith.constant 0 : i32
    %c0_i32_1 = arith.constant 0 : i32
    return %c0_i32, %c0_i32_0 : i32, i32
  }
  func.func @transform_7(%arg0: i32) -> (i32, i32) {
    %c0_i32 = arith.constant 0 : i32
    %c0_i32_0 = arith.constant 0 : i32
    return %arg0, %c0_i32 : i32, i32
  }
}

</mosaic_0001>

<llo_original>
// kernel: tpu_custom_call.1
$region0: #{tpu_custom_call.1}
  #allocation0 [shape = 'u32[]', space=smem, size = 0x4, offset = 0x4, fixed_abs, tag = 'smem constant byte address 0x4 - core index']
  #allocation1 [shape = 'u32[144,128]{1,0:T(1,128)}', space=vmem, size = 0x12000, scoped, tag = 'internal scratch']
  %s0 = inlined_call_operand.vmem [shape: bf16[256,8], index: 0, kind: input, shape index: {}]
  %s1 = inlined_call_operand.vmem [shape: bf16[8,128], index: 1, kind: input, shape index: {}]
  %s2 = inlined_call_operand.vmem [shape: f32[1,128], index: 2, kind: input, shape index: {}]
  %s3 = inlined_call_operand.vmem [shape: bf16[128,128], index: 3, kind: input, shape index: {}]
  %s4 = inlined_call_operand.vmem [shape: f32[1,128], index: 4, kind: input, shape index: {}]
  %s5 = inlined_call_operand.vmem [shape: f32[128,4], index: 5, kind: input, shape index: {}]
  %s6 = inlined_call_operand.vmem [shape: f32[1,4], index: 6, kind: input, shape index: {}]
  %s7 = inlined_call_operand.vmem [shape: f32[256,4], index: 7, kind: output, shape index: {}]
  %s8 = sld [smem:[#allocation0]]
  $region38: #{tpu_custom_call.1} parent=0
    _
  %s10 = ssub.s32 1, %s8
  %s11 = scalar_select 0, %s10, %s8
  // Predicated region
  $region2: #{tpu_custom_call.1} parent=0 // pred_check
    _
  $region3: #{tpu_custom_call.1} parent=0 // pred_check_branch
    %13 = sbr.rel (0) target = $region5
  $region4: #{tpu_custom_call.1} parent=0 // pred_region
    _
  $region5: #{tpu_custom_call.1} parent=0 // pred_fallthru
    _
  // Predicated region
  $region6: #{tpu_custom_call.1} parent=0 // pred_check
    _
  $region7: #{tpu_custom_call.1} parent=0 // pred_check_branch
    %15 = sbr.rel (0) target = $region9
  $region8: #{tpu_custom_call.1} parent=0 // pred_region
    _
  $region9: #{tpu_custom_call.1} parent=0 // pred_fallthru
    _
  // Predicated region
  $region10: #{tpu_custom_call.1} parent=0 // pred_check
    _
  $region11: #{tpu_custom_call.1} parent=0 // pred_check_branch
    %17 = sbr.rel (0) target = $region13
  $region12: #{tpu_custom_call.1} parent=0 // pred_region
    _
  $region13: #{tpu_custom_call.1} parent=0 // pred_fallthru
    _
  // Predicated region
  $region14: #{tpu_custom_call.1} parent=0 // pred_check
    _
  $region15: #{tpu_custom_call.1} parent=0 // pred_check_branch
    %19 = sbr.rel (0) target = $region17
  $region16: #{tpu_custom_call.1} parent=0 // pred_region
    _
  $region17: #{tpu_custom_call.1} parent=0 // pred_fallthru
    _
  // Predicated region
  $region18: #{tpu_custom_call.1} parent=0 // pred_check
    _
  $region19: #{tpu_custom_call.1} parent=0 // pred_check_branch
    %21 = sbr.rel (0) target = $region21
  $region20: #{tpu_custom_call.1} parent=0 // pred_region
    _
  $region21: #{tpu_custom_call.1} parent=0 // pred_fallthru
    _
  // Predicated region
  $region22: #{tpu_custom_call.1} parent=0 // pred_check
    _
  $region23: #{tpu_custom_call.1} parent=0 // pred_check_branch
    %23 = sbr.rel (0) target = $region25
  $region24: #{tpu_custom_call.1} parent=0 // pred_region
    _
  $region25: #{tpu_custom_call.1} parent=0 // pred_fallthru
    _
  // Predicated region
  $region26: #{tpu_custom_call.1} parent=0 // pred_check
    _
  $region27: #{tpu_custom_call.1} parent=0 // pred_check_branch
    %25 = sbr.rel (0) target = $region29
  $region28: #{tpu_custom_call.1} parent=0 // pred_region
    _
  $region29: #{tpu_custom_call.1} parent=0 // pred_fallthru
    _
  %v27 = vld [vmem:[%s0] sm:$0xf]
  %v28 = vld [vmem:[%s0 + $0x4] sm:$0xf]
  %v29 = vld [vmem:[%s0 + $0x8] sm:$0xf]
  %v30 = vld [vmem:[%s0 + $0xc] sm:$0xf]
  %v31 = vld [vmem:[%s0 + $0x10] sm:$0xf]
  %v32 = vld [vmem:[%s0 + $0x14] sm:$0xf]
  %v33 = vld [vmem:[%s0 + $0x18] sm:$0xf]
  %v34 = vld [vmem:[%s0 + $0x1c] sm:$0xf]
  %v35 = vld [vmem:[%s0 + $0x20] sm:$0xf]
  %v36 = vld [vmem:[%s0 + $0x24] sm:$0xf]
  %v37 = vld [vmem:[%s0 + $0x28] sm:$0xf]
  %v38 = vld [vmem:[%s0 + $0x2c] sm:$0xf]
  %v39 = vld [vmem:[%s0 + $0x30] sm:$0xf]
  %v40 = vld [vmem:[%s0 + $0x34] sm:$0xf]
  %v41 = vld [vmem:[%s0 + $0x38] sm:$0xf]
  %v42 = vld [vmem:[%s0 + $0x3c] sm:$0xf]
  %v43 = vld [vmem:[%s0 + $0x40] sm:$0xf]
  %v44 = vld [vmem:[%s0 + $0x44] sm:$0xf]
  %v45 = vld [vmem:[%s0 + $0x48] sm:$0xf]
  %v46 = vld [vmem:[%s0 + $0x4c] sm:$0xf]
  %v47 = vld [vmem:[%s0 + $0x50] sm:$0xf]
  %v48 = vld [vmem:[%s0 + $0x54] sm:$0xf]
  %v49 = vld [vmem:[%s0 + $0x58] sm:$0xf]
  %v50 = vld [vmem:[%s0 + $0x5c] sm:$0xf]
  %v51 = vld [vmem:[%s0 + $0x60] sm:$0xf]
  %v52 = vld [vmem:[%s0 + $0x64] sm:$0xf]
  %v53 = vld [vmem:[%s0 + $0x68] sm:$0xf]
  %v54 = vld [vmem:[%s0 + $0x6c] sm:$0xf]
  %v55 = vld [vmem:[%s0 + $0x70] sm:$0xf]
  %v56 = vld [vmem:[%s0 + $0x74] sm:$0xf]
  %v57 = vld [vmem:[%s0 + $0x78] sm:$0xf]
  %v58 = vld [vmem:[%s0 + $0x7c] sm:$0xf]
  %v59 = vld [vmem:[%s2] sm:$0x1]
  %v60 = vld [vmem:[%s1] sm:$0xf]
  %v93 = vunpack.c.l.b16 %v27
  %v94 = vunpack.c.l.b16 %v28
  %v95 = vunpack.c.l.b16 %v29
  %v96 = vunpack.c.l.b16 %v30
  %v97 = vunpack.c.l.b16 %v31
  %v98 = vunpack.c.l.b16 %v32
  %v99 = vunpack.c.l.b16 %v33
  %v100 = vunpack.c.l.b16 %v34
  %v101 = vunpack.c.l.b16 %v35
  %v102 = vunpack.c.l.b16 %v36
  %v103 = vunpack.c.l.b16 %v37
  %v104 = vunpack.c.l.b16 %v38
  %v105 = vunpack.c.l.b16 %v39
  %v106 = vunpack.c.l.b16 %v40
  %v107 = vunpack.c.l.b16 %v41
  %v108 = vunpack.c.l.b16 %v42
  %v109 = vunpack.c.l.b16 %v43
  %v110 = vunpack.c.l.b16 %v44
  %v111 = vunpack.c.l.b16 %v45
  %v112 = vunpack.c.l.b16 %v46
  %v113 = vunpack.c.l.b16 %v47
  %v114 = vunpack.c.l.b16 %v48
  %v115 = vunpack.c.l.b16 %v49
  %v116 = vunpack.c.l.b16 %v50
  %v117 = vunpack.c.l.b16 %v51
  %v118 = vunpack.c.l.b16 %v52
  %v119 = vunpack.c.l.b16 %v53
  %v120 = vunpack.c.l.b16 %v54
  %v121 = vunpack.c.l.b16 %v55
  %v122 = vunpack.c.l.b16 %v56
  %v123 = vunpack.c.l.b16 %v57
  %v124 = vunpack.c.l.b16 %v58
  %v125 = vpack.c.b16 %v94, %v93
  %v126 = vpack.c.b16 %v96, %v95
  %v127 = vpack.c.b16 %v98, %v97
  %v128 = vpack.c.b16 %v100, %v99
  %v129 = vpack.c.b16 %v102, %v101
  %v130 = vpack.c.b16 %v104, %v103
  %v131 = vpack.c.b16 %v106, %v105
  %v132 = vpack.c.b16 %v108, %v107
  %v133 = vpack.c.b16 %v110, %v109
  %v134 = vpack.c.b16 %v112, %v111
  %v135 = vpack.c.b16 %v114, %v113
  %v136 = vpack.c.b16 %v116, %v115
  %v137 = vpack.c.b16 %v118, %v117
  %v138 = vpack.c.b16 %v120, %v119
  %v139 = vpack.c.b16 %v122, %v121
  %v140 = vpack.c.b16 %v124, %v123
  %vm141 = vcmask 64512
  %v143 = vsel %vm141, %v125, 0
  %v146 = vsel %vm141, %v126, 0
  %v149 = vsel %vm141, %v127, 0
  %v152 = vsel %vm141, %v128, 0
  %v155 = vsel %vm141, %v129, 0
  %v158 = vsel %vm141, %v130, 0
  %v161 = vsel %vm141, %v131, 0
  %v164 = vsel %vm141, %v132, 0
  %v167 = vsel %vm141, %v133, 0
  %v170 = vsel %vm141, %v134, 0
  %v173 = vsel %vm141, %v135, 0
  %v176 = vsel %vm141, %v136, 0
  %v179 = vsel %vm141, %v137, 0
  %v182 = vsel %vm141, %v138, 0
  %v185 = vsel %vm141, %v139, 0
  %v188 = vsel %vm141, %v140, 0
  %vm190 = vcmask 1043456
  %v192 = vsel %vm190, %v60, 0
  %194 = vmatprep.subr.bf16.mxu0 0
  %195 = vmatpush1.bf16.msra.mxu0 %v192
  %196 = vmatprep.subr.bf16.mxu0 0
  %197 = vmatpush1.bf16.msra.mxu0 0
  %198 = vmatprep.subr.bf16.mxu0 0
  %199 = vmatpush1.bf16.msra.mxu0 0
  %200 = vmatprep.subr.bf16.mxu0 0
  %201 = vmatpush1.bf16.msra.mxu0 0
  %202 = vmatprep.subr.bf16.mxu0 0
  %203 = vmatpush1.bf16.msra.mxu0 0
  %204 = vmatprep.subr.bf16.mxu0 0
  %205 = vmatpush1.bf16.msra.mxu0 0
  %206 = vmatprep.subr.bf16.mxu0 0
  %207 = vmatpush1.bf16.msra.mxu0 0
  %208 = vmatprep.subr.bf16.mxu0 0
  %209 = vmatpush1.bf16.msra.mxu0 0
  %210 = vmatprep.subr.bf16.mxu0 0
  %211 = vmatpush1.bf16.msra.mxu0 0
  %212 = vmatprep.subr.bf16.mxu0 0
  %213 = vmatpush1.bf16.msra.mxu0 0
  %214 = vmatprep.subr.bf16.mxu0 0
  %215 = vmatpush1.bf16.msra.mxu0 0
  %216 = vmatprep.subr.bf16.mxu0 0
  %217 = vmatpush1.bf16.msra.mxu0 0
  %218 = vmatprep.subr.bf16.mxu0 0
  %219 = vmatpush1.bf16.msra.mxu0 0
  %220 = vmatprep.subr.bf16.mxu0 0
  %221 = vmatpush1.bf16.msra.mxu0 0
  %222 = vmatprep.subr.bf16.mxu0 0
  %223 = vmatpush1.bf16.msra.mxu0 0
  %224 = vmatprep.subr.bf16.mxu0 0
  %225 = vmatpush1.bf16.msra.mxu0 0
  %226 = vmatprep.mubr.bf16.mxu0 0
  %227 = vmatmul.mubr.bf16.gmra.mrb[0].mxu0 %v143
  %v228 = vpop.f32.mrb[0].mxu0
  %v229 = vadd.f32 0.0, %v228
  %v230 = vpop.f32.mrb[0].mxu0
  %v231 = vpop.f32.mrb[0].mxu0
  %v232 = vadd.f32 0.0, %v231
  %v233 = vpop.f32.mrb[0].mxu0
  %234 = vmatprep.mubr.bf16.mxu0 0
  %235 = vmatmul.mubr.bf16.gmra.mrb[0].mxu0 %v146
  %v236 = vpop.f32.mrb[0].mxu0
  %v237 = vadd.f32 0.0, %v236
  %v238 = vpop.f32.mrb[0].mxu0
  %v239 = vpop.f32.mrb[0].mxu0
  %v240 = vadd.f32 0.0, %v239
  %v241 = vpop.f32.mrb[0].mxu0
  %242 = vmatprep.mubr.bf16.mxu0 0
  %243 = vmatmul.mubr.bf16.gmra.mrb[0].mxu0 %v149
  %v244 = vpop.f32.mrb[0].mxu0
  %v245 = vadd.f32 0.0, %v244
  %v246 = vpop.f32.mrb[0].mxu0
  %v247 = vpop.f32.mrb[0].mxu0
  %v248 = vadd.f32 0.0, %v247
  %v249 = vpop.f32.mrb[0].mxu0
  %250 = vmatprep.mubr.bf16.mxu0 0
  %251 = vmatmul.mubr.bf16.gmra.mrb[0].mxu0 %v152
  %v252 = vpop.f32.mrb[0].mxu0
  %v253 = vadd.f32 0.0, %v252
  %v254 = vpop.f32.mrb[0].mxu0
  %v255 = vpop.f32.mrb[0].mxu0
  %v256 = vadd.f32 0.0, %v255
  %v257 = vpop.f32.mrb[0].mxu0
  %258 = vmatprep.mubr.bf16.mxu0 0
  %259 = vmatmul.mubr.bf16.gmra.mrb[0].mxu0 %v155
  %v260 = vpop.f32.mrb[0].mxu0
  %v261 = vadd.f32 0.0, %v260
  %v262 = vpop.f32.mrb[0].mxu0
  %v263 = vpop.f32.mrb[0].mxu0
  %v264 = vadd.f32 0.0, %v263
  %v265 = vpop.f32.mrb[0].mxu0
  %266 = vmatprep.mubr.bf16.mxu0 0
  %267 = vmatmul.mubr.bf16.gmra.mrb[0].mxu0 %v158
  %v268 = vpop.f32.mrb[0].mxu0
  %v269 = vadd.f32 0.0, %v268
  %v270 = vpop.f32.mrb[0].mxu0
  %v271 = vpop.f32.mrb[0].mxu0
  %v272 = vadd.f32 0.0, %v271
  %v273 = vpop.f32.mrb[0].mxu0
  %274 = vmatprep.mubr.bf16.mxu0 0
  %275 = vmatmul.mubr.bf16.gmra.mrb[0].mxu0 %v161
  %v276 = vpop.f32.mrb[0].mxu0
  %v277 = vadd.f32 0.0, %v276
  %v278 = vpop.f32.mrb[0].mxu0
  %v279 = vpop.f32.mrb[0].mxu0
  %v280 = vadd.f32 0.0, %v279
  %v281 = vpop.f32.mrb[0].mxu0
  %282 = vmatprep.mubr.bf16.mxu0 0
  %283 = vmatmul.mubr.bf16.gmra.mrb[0].mxu0 %v164
  %v284 = vpop.f32.mrb[0].mxu0
  %v285 = vadd.f32 0.0, %v284
  %v286 = vpop.f32.mrb[0].mxu0
  %v287 = vpop.f32.mrb[0].mxu0
  %v288 = vadd.f32 0.0, %v287
  %v289 = vpop.f32.mrb[0].mxu0
  %290 = vmatprep.mubr.bf16.mxu0 0
  %291 = vmatmul.mubr.bf16.gmra.mrb[0].mxu0 %v167
  %v292 = vpop.f32.mrb[0].mxu0
  %v293 = vadd.f32 0.0, %v292
  %v294 = vpop.f32.mrb[0].mxu0
  %v295 = vpop.f32.mrb[0].mxu0
  %v296 = vadd.f32 0.0, %v295
  %v297 = vpop.f32.mrb[0].mxu0
  %298 = vmatprep.mubr.bf16.mxu0 0
  %299 = vmatmul.mubr.bf16.gmra.mrb[0].mxu0 %v170
  %v300 = vpop.f32.mrb[0].mxu0
  %v301 = vadd.f32 0.0, %v300
  %v302 = vpop.f32.mrb[0].mxu0
  %v303 = vpop.f32.mrb[0].mxu0
  %v304 = vadd.f32 0.0, %v303
  %v305 = vpop.f32.mrb[0].mxu0
  %306 = vmatprep.mubr.bf16.mxu0 0
  %307 = vmatmul.mubr.bf16.gmra.mrb[0].mxu0 %v173
  %v308 = vpop.f32.mrb[0].mxu0
  %v309 = vadd.f32 0.0, %v308
  %v310 = vpop.f32.mrb[0].mxu0
  %v311 = vpop.f32.mrb[0].mxu0
  %v312 = vadd.f32 0.0, %v311
  %v313 = vpop.f32.mrb[0].mxu0
  %314 = vmatprep.mubr.bf16.mxu0 0
  %315 = vmatmul.mubr.bf16.gmra.mrb[0].mxu0 %v176
  %v316 = vpop.f32.mrb[0].mxu0
  %v317 = vadd.f32 0.0, %v316
  %v318 = vpop.f32.mrb[0].mxu0
  %v319 = vpop.f32.mrb[0].mxu0
  %v320 = vadd.f32 0.0, %v319
  %v321 = vpop.f32.mrb[0].mxu0
  %322 = vmatprep.mubr.bf16.mxu0 0
  %323 = vmatmul.mubr.bf16.gmra.mrb[0].mxu0 %v179
  %v324 = vpop.f32.mrb[0].mxu0
  %v325 = vadd.f32 0.0, %v324
  %v326 = vpop.f32.mrb[0].mxu0
  %v327 = vpop.f32.mrb[0].mxu0
  %v328 = vadd.f32 0.0, %v327
  %v329 = vpop.f32.mrb[0].mxu0
  %330 = vmatprep.mubr.bf16.mxu0 0
  %331 = vmatmul.mubr.bf16.gmra.mrb[0].mxu0 %v182
  %v332 = vpop.f32.mrb[0].mxu0
  %v333 = vadd.f32 0.0, %v332
  %v334 = vpop.f32.mrb[0].mxu0
  %v335 = vpop.f32.mrb[0].mxu0
  %v336 = vadd.f32 0.0, %v335
  %v337 = vpop.f32.mrb[0].mxu0
  %338 = vmatprep.mubr.bf16.mxu0 0
  %339 = vmatmul.mubr.bf16.gmra.mrb[0].mxu0 %v185
  %v340 = vpop.f32.mrb[0].mxu0
  %v341 = vadd.f32 0.0, %v340
  %v342 = vpop.f32.mrb[0].mxu0
  %v343 = vpop.f32.mrb[0].mxu0
  %v344 = vadd.f32 0.0, %v343
  %v345 = vpop.f32.mrb[0].mxu0
  %346 = vmatprep.mubr.bf16.mxu0 0
  %347 = vmatmul.mubr.bf16.gmra.mrb[0].mxu0 %v188
  %v348 = vpop.f32.mrb[0].mxu0
  %v349 = vadd.f32 0.0, %v348
  %v350 = vpop.f32.mrb[0].mxu0
  %v351 = vpop.f32.mrb[0].mxu0
  %v352 = vadd.f32 0.0, %v351
  %v353 = vpop.f32.mrb[0].mxu0
  %354 = vdwg.mxu0
  %v356 = vlaneseq
  %v357 = vshrl.u32 %v356, 7
  %v358 = vsub.s32 0, %v357
  %v359 = vrot.slane %v59, %v358
  %v361 = vadd.f32 %v359, %v229
  %v362 = vadd.f32 %v359, %v232
  %v363 = vadd.f32 %v359, %v237
  %v364 = vadd.f32 %v359, %v240
  %v365 = vadd.f32 %v359, %v245
  %v366 = vadd.f32 %v359, %v248
  %v367 = vadd.f32 %v359, %v253
  %v368 = vadd.f32 %v359, %v256
  %v369 = vadd.f32 %v359, %v261
  %v370 = vadd.f32 %v359, %v264
  %v371 = vadd.f32 %v359, %v269
  %v372 = vadd.f32 %v359, %v272
  %v373 = vadd.f32 %v359, %v277
  %v374 = vadd.f32 %v359, %v280
  %v375 = vadd.f32 %v359, %v285
  %v376 = vadd.f32 %v359, %v288
  %v377 = vadd.f32 %v359, %v293
  %v378 = vadd.f32 %v359, %v296
  %v379 = vadd.f32 %v359, %v301
  %v380 = vadd.f32 %v359, %v304
  %v381 = vadd.f32 %v359, %v309
  %v382 = vadd.f32 %v359, %v312
  %v383 = vadd.f32 %v359, %v317
  %v384 = vadd.f32 %v359, %v320
  %v385 = vadd.f32 %v359, %v325
  %v386 = vadd.f32 %v359, %v328
  %v387 = vadd.f32 %v359, %v333
  %v388 = vadd.f32 %v359, %v336
  %v389 = vadd.f32 %v359, %v341
  %v390 = vadd.f32 %v359, %v344
  %v391 = vadd.f32 %v359, %v349
  %v392 = vadd.f32 %v359, %v352
  %v393 = vmax.f32 %v361, 0.0
  %v394 = vmax.f32 %v362, 0.0
  %v395 = vmax.f32 %v363, 0.0
  %v396 = vmax.f32 %v364, 0.0
  %v397 = vmax.f32 %v365, 0.0
  %v398 = vmax.f32 %v366, 0.0
  %v399 = vmax.f32 %v367, 0.0
  %v400 = vmax.f32 %v368, 0.0
  %v401 = vmax.f32 %v369, 0.0
  %v402 = vmax.f32 %v370, 0.0
  %v403 = vmax.f32 %v371, 0.0
  %v404 = vmax.f32 %v372, 0.0
  %v405 = vmax.f32 %v373, 0.0
  %v406 = vmax.f32 %v374, 0.0
  %v407 = vmax.f32 %v375, 0.0
  %v408 = vmax.f32 %v376, 0.0
  %v409 = vmax.f32 %v377, 0.0
  %v410 = vmax.f32 %v378, 0.0
  %v411 = vmax.f32 %v379, 0.0
  %v412 = vmax.f32 %v380, 0.0
  %v413 = vmax.f32 %v381, 0.0
  %v414 = vmax.f32 %v382, 0.0
  %v415 = vmax.f32 %v383, 0.0
  %v416 = vmax.f32 %v384, 0.0
  %v417 = vmax.f32 %v385, 0.0
  %v418 = vmax.f32 %v386, 0.0
  %v419 = vmax.f32 %v387, 0.0
  %v420 = vmax.f32 %v388, 0.0
  %v421 = vmax.f32 %v389, 0.0
  %v422 = vmax.f32 %v390, 0.0
  %v423 = vmax.f32 %v391, 0.0
  %v424 = vmax.f32 %v392, 0.0
  %v425 = vld [vmem:[%s4] sm:$0x1]
  %v426 = vpack.c.bf16 %v394, %v393
  %v427 = vpack.c.bf16 %v396, %v395
  %v428 = vpack.c.bf16 %v398, %v397
  %v429 = vpack.c.bf16 %v400, %v399
  %v430 = vpack.c.bf16 %v402, %v401
  %v431 = vpack.c.bf16 %v404, %v403
  %v432 = vpack.c.bf16 %v406, %v405
  %v433 = vpack.c.bf16 %v408, %v407
  %v434 = vpack.c.bf16 %v410, %v409
  %v435 = vpack.c.bf16 %v412, %v411
  %v436 = vpack.c.bf16 %v414, %v413
  %v437 = vpack.c.bf16 %v416, %v415
  %v438 = vpack.c.bf16 %v418, %v417
  %v439 = vpack.c.bf16 %v420, %v419
  %v440 = vpack.c.bf16 %v422, %v421
  %v441 = vpack.c.bf16 %v424, %v423
  %v442 = vld [vmem:[%s3] sm:$0xf]
  %v443 = vld [vmem:[%s3 + $0x4] sm:$0xf]
  %v444 = vld [vmem:[%s3 + $0x8] sm:$0xf]
  %v445 = vld [vmem:[%s3 + $0xc] sm:$0xf]
  %v446 = vld [vmem:[%s3 + $0x10] sm:$0xf]
  %v447 = vld [vmem:[%s3 + $0x14] sm:$0xf]
  %v448 = vld [vmem:[%s3 + $0x18] sm:$0xf]
  %v449 = vld [vmem:[%s3 + $0x1c] sm:$0xf]
  %v450 = vld [vmem:[%s3 + $0x20] sm:$0xf]
  %v451 = vld [vmem:[%s3 + $0x24] sm:$0xf]
  %v452 = vld [vmem:[%s3 + $0x28] sm:$0xf]
  %v453 = vld [vmem:[%s3 + $0x2c] sm:$0xf]
  %v454 = vld [vmem:[%s3 + $0x30] sm:$0xf]
  %v455 = vld [vmem:[%s3 + $0x34] sm:$0xf]
  %v456 = vld [vmem:[%s3 + $0x38] sm:$0xf]
  %v457 = vld [vmem:[%s3 + $0x3c] sm:$0xf]
  %v474 = vunpack.c.l.b16 %v442
  %v475 = vunpack.c.l.b16 %v443
  %v476 = vunpack.c.l.b16 %v444
  %v477 = vunpack.c.l.b16 %v445
  %v478 = vunpack.c.l.b16 %v446
  %v479 = vunpack.c.l.b16 %v447
  %v480 = vunpack.c.l.b16 %v448
  %v481 = vunpack.c.l.b16 %v449
  %v482 = vunpack.c.l.b16 %v450
  %v483 = vunpack.c.l.b16 %v451
  %v484 = vunpack.c.l.b16 %v452
  %v485 = vunpack.c.l.b16 %v453
  %v486 = vunpack.c.l.b16 %v454
  %v487 = vunpack.c.l.b16 %v455
  %v488 = vunpack.c.l.b16 %v456
  %v489 = vunpack.c.l.b16 %v457
  %v490 = vpack.c.b16 %v475, %v474
  %v491 = vpack.c.b16 %v477, %v476
  %v492 = vpack.c.b16 %v479, %v478
  %v493 = vpack.c.b16 %v481, %v480
  %v494 = vpack.c.b16 %v483, %v482
  %v495 = vpack.c.b16 %v485, %v484
  %v496 = vpack.c.b16 %v487, %v486
  %v497 = vpack.c.b16 %v489, %v488
  %506 = vmatprep.subr.bf16.mxu0 0
  %507 = vmatpush1.bf16.msra.mxu0 %v490
  %508 = vmatprep.subr.bf16.mxu0 0
  %509 = vmatpush1.bf16.msra.mxu0 %v491
  %510 = vmatprep.subr.bf16.mxu0 0
  %511 = vmatpush1.bf16.msra.mxu0 %v492
  %512 = vmatprep.subr.bf16.mxu0 0
  %513 = vmatpush1.bf16.msra.mxu0 %v493
  %514 = vmatprep.subr.bf16.mxu0 0
  %515 = vmatpush1.bf16.msra.mxu0 %v494
  %516 = vmatprep.subr.bf16.mxu0 0
  %517 = vmatpush1.bf16.msra.mxu0 %v495
  %518 = vmatprep.subr.bf16.mxu0 0
  %519 = vmatpush1.bf16.msra.mxu0 %v496
  %520 = vmatprep.subr.bf16.mxu0 0
  %521 = vmatpush1.bf16.msra.mxu0 %v497
  %522 = vmatprep.subr.bf16.mxu0 0
  %523 = vmatpush1.bf16.msra.mxu0 0
  %524 = vmatprep.subr.bf16.mxu0 0
  %525 = vmatpush1.bf16.msra.mxu0 0
  %526 = vmatprep.subr.bf16.mxu0 0
  %527 = vmatpush1.bf16.msra.mxu0 0
  %528 = vmatprep.subr.bf16.mxu0 0
  %529 = vmatpush1.bf16.msra.mxu0 0
  %530 = vmatprep.subr.bf16.mxu0 0
  %531 = vmatpush1.bf16.msra.mxu0 0
  %532 = vmatprep.subr.bf16.mxu0 0
  %533 = vmatpush1.bf16.msra.mxu0 0
  %534 = vmatprep.subr.bf16.mxu0 0
  %535 = vmatpush1.bf16.msra.mxu0 0
  %536 = vmatprep.subr.bf16.mxu0 0
  %537 = vmatpush1.bf16.msra.mxu0 0
  %538 = vmatprep.mubr.bf16.mxu0 0
  %539 = vmatmul.mubr.bf16.gmra.mrb[0].mxu0 %v426
  %v540 = vpop.f32.mrb[0].mxu0
  %v541 = vadd.f32 0.0, %v540
  %v542 = vpop.f32.mrb[0].mxu0
  %v543 = vpop.f32.mrb[0].mxu0
  %v544 = vadd.f32 0.0, %v543
  %v545 = vpop.f32.mrb[0].mxu0
  %546 = vmatprep.mubr.bf16.mxu0 0
  %547 = vmatmul.mubr.bf16.gmra.mrb[0].mxu0 %v427
  %v548 = vpop.f32.mrb[0].mxu0
  %v549 = vadd.f32 0.0, %v548
  %v550 = vpop.f32.mrb[0].mxu0
  %v551 = vpop.f32.mrb[0].mxu0
  %v552 = vadd.f32 0.0, %v551
  %v553 = vpop.f32.mrb[0].mxu0
  %554 = vmatprep.mubr.bf16.mxu0 0
  %555 = vmatmul.mubr.bf16.gmra.mrb[0].mxu0 %v428
  %v556 = vpop.f32.mrb[0].mxu0
  %v557 = vadd.f32 0.0, %v556
  %v558 = vpop.f32.mrb[0].mxu0
  %v559 = vpop.f32.mrb[0].mxu0
  %v560 = vadd.f32 0.0, %v559
  %v561 = vpop.f32.mrb[0].mxu0
  %562 = vmatprep.mubr.bf16.mxu0 0
  %563 = vmatmul.mubr.bf16.gmra.mrb[0].mxu0 %v429
  %v564 = vpop.f32.mrb[0].mxu0
  %v565 = vadd.f32 0.0, %v564
  %v566 = vpop.f32.mrb[0].mxu0
  %v567 = vpop.f32.mrb[0].mxu0
  %v568 = vadd.f32 0.0, %v567
  %v569 = vpop.f32.mrb[0].mxu0
  %570 = vmatprep.mubr.bf16.mxu0 0
  %571 = vmatmul.mubr.bf16.gmra.mrb[0].mxu0 %v430
  %v572 = vpop.f32.mrb[0].mxu0
  %v573 = vadd.f32 0.0, %v572
  %v574 = vpop.f32.mrb[0].mxu0
  %v575 = vpop.f32.mrb[0].mxu0
  %v576 = vadd.f32 0.0, %v575
  %v577 = vpop.f32.mrb[0].mxu0
  %578 = vmatprep.mubr.bf16.mxu0 0
  %579 = vmatmul.mubr.bf16.gmra.mrb[0].mxu0 %v431
  %v580 = vpop.f32.mrb[0].mxu0
  %v581 = vadd.f32 0.0, %v580
  %v582 = vpop.f32.mrb[0].mxu0
  %v583 = vpop.f32.mrb[0].mxu0
  %v584 = vadd.f32 0.0, %v583
  %v585 = vpop.f32.mrb[0].mxu0
  %586 = vmatprep.mubr.bf16.mxu0 0
  %587 = vmatmul.mubr.bf16.gmra.mrb[0].mxu0 %v432
  %v588 = vpop.f32.mrb[0].mxu0
  %v589 = vadd.f32 0.0, %v588
  %v590 = vpop.f32.mrb[0].mxu0
  %v591 = vpop.f32.mrb[0].mxu0
  %v592 = vadd.f32 0.0, %v591
  %v593 = vpop.f32.mrb[0].mxu0
  %594 = vmatprep.mubr.bf16.mxu0 0
  %595 = vmatmul.mubr.bf16.gmra.mrb[0].mxu0 %v433
  %v596 = vpop.f32.mrb[0].mxu0
  %v597 = vadd.f32 0.0, %v596
  %v598 = vpop.f32.mrb[0].mxu0
  %v599 = vpop.f32.mrb[0].mxu0
  %v600 = vadd.f32 0.0, %v599
  %v601 = vpop.f32.mrb[0].mxu0
  %602 = vmatprep.mubr.bf16.mxu0 0
  %603 = vmatmul.mubr.bf16.gmra.mrb[0].mxu0 %v434
  %v604 = vpop.f32.mrb[0].mxu0
  %v605 = vadd.f32 0.0, %v604
  %v606 = vpop.f32.mrb[0].mxu0
  %v607 = vpop.f32.mrb[0].mxu0
  %v608 = vadd.f32 0.0, %v607
  %v609 = vpop.f32.mrb[0].mxu0
  %610 = vmatprep.mubr.bf16.mxu0 0
  %611 = vmatmul.mubr.bf16.gmra.mrb[0].mxu0 %v435
  %v612 = vpop.f32.mrb[0].mxu0
  %v613 = vadd.f32 0.0, %v612
  %v614 = vpop.f32.mrb[0].mxu0
  %v615 = vpop.f32.mrb[0].mxu0
  %v616 = vadd.f32 0.0, %v615
  %v617 = vpop.f32.mrb[0].mxu0
  %618 = vmatprep.mubr.bf16.mxu0 0
  %619 = vmatmul.mubr.bf16.gmra.mrb[0].mxu0 %v436
  %v620 = vpop.f32.mrb[0].mxu0
  %v621 = vadd.f32 0.0, %v620
  %v622 = vpop.f32.mrb[0].mxu0
  %v623 = vpop.f32.mrb[0].mxu0
  %v624 = vadd.f32 0.0, %v623
  %v625 = vpop.f32.mrb[0].mxu0
  %626 = vmatprep.mubr.bf16.mxu0 0
  %627 = vmatmul.mubr.bf16.gmra.mrb[0].mxu0 %v437
  %v628 = vpop.f32.mrb[0].mxu0
  %v629 = vadd.f32 0.0, %v628
  %v630 = vpop.f32.mrb[0].mxu0
  %v631 = vpop.f32.mrb[0].mxu0
  %v632 = vadd.f32 0.0, %v631
  %v633 = vpop.f32.mrb[0].mxu0
  %634 = vmatprep.mubr.bf16.mxu0 0
  %635 = vmatmul.mubr.bf16.gmra.mrb[0].mxu0 %v438
  %v636 = vpop.f32.mrb[0].mxu0
  %v637 = vadd.f32 0.0, %v636
  %v638 = vpop.f32.mrb[0].mxu0
  %v639 = vpop.f32.mrb[0].mxu0
  %v640 = vadd.f32 0.0, %v639
  %v641 = vpop.f32.mrb[0].mxu0
  %642 = vmatprep.mubr.bf16.mxu0 0
  %643 = vmatmul.mubr.bf16.gmra.mrb[0].mxu0 %v439
  %v644 = vpop.f32.mrb[0].mxu0
  %v645 = vadd.f32 0.0, %v644
  %v646 = vpop.f32.mrb[0].mxu0
  %v647 = vpop.f32.mrb[0].mxu0
  %v648 = vadd.f32 0.0, %v647
  %v649 = vpop.f32.mrb[0].mxu0
  %650 = vmatprep.mubr.bf16.mxu0 0
  %651 = vmatmul.mubr.bf16.gmra.mrb[0].mxu0 %v440
  %v652 = vpop.f32.mrb[0].mxu0
  %v653 = vadd.f32 0.0, %v652
  %v654 = vpop.f32.mrb[0].mxu0
  %v655 = vpop.f32.mrb[0].mxu0
  %v656 = vadd.f32 0.0, %v655
  %v657 = vpop.f32.mrb[0].mxu0
  %658 = vmatprep.mubr.bf16.mxu0 0
  %659 = vmatmul.mubr.bf16.gmra.mrb[0].mxu0 %v441
  %v660 = vpop.f32.mrb[0].mxu0
  %v661 = vadd.f32 0.0, %v660
  %v662 = vpop.f32.mrb[0].mxu0
  %v663 = vpop.f32.mrb[0].mxu0
  %v664 = vadd.f32 0.0, %v663
  %v665 = vpop.f32.mrb[0].mxu0
  %666 = vdwg.mxu0
  %v668 = vlaneseq
  %v669 = vshrl.u32 %v668, 7
  %v670 = vsub.s32 0, %v669
  %v671 = vrot.slane %v425, %v670
  %v673 = vadd.f32 %v671, %v541
  %v674 = vadd.f32 %v671, %v544
  %v675 = vadd.f32 %v671, %v549
  %v676 = vadd.f32 %v671, %v552
  %v677 = vadd.f32 %v671, %v557
  %v678 = vadd.f32 %v671, %v560
  %v679 = vadd.f32 %v671, %v565
  %v680 = vadd.f32 %v671, %v568
  %v681 = vadd.f32 %v671, %v573
  %v682 = vadd.f32 %v671, %v576
  %v683 = vadd.f32 %v671, %v581
  %v684 = vadd.f32 %v671, %v584
  %v685 = vadd.f32 %v671, %v589
  %v686 = vadd.f32 %v671, %v592
  %v687 = vadd.f32 %v671, %v597
  %v688 = vadd.f32 %v671, %v600
  %v689 = vadd.f32 %v671, %v605
  %v690 = vadd.f32 %v671, %v608
  %v691 = vadd.f32 %v671, %v613
  %v692 = vadd.f32 %v671, %v616
  %v693 = vadd.f32 %v671, %v621
  %v694 = vadd.f32 %v671, %v624
  %v695 = vadd.f32 %v671, %v629
  %v696 = vadd.f32 %v671, %v632
  %v697 = vadd.f32 %v671, %v637
  %v698 = vadd.f32 %v671, %v640
  %v699 = vadd.f32 %v671, %v645
  %v700 = vadd.f32 %v671, %v648
  %v701 = vadd.f32 %v671, %v653
  %v702 = vadd.f32 %v671, %v656
  %v703 = vadd.f32 %v671, %v661
  %v704 = vadd.f32 %v671, %v664
  %v705 = vmax.f32 %v673, 0.0
  %v706 = vmax.f32 %v674, 0.0
  %v707 = vmax.f32 %v675, 0.0
  %v708 = vmax.f32 %v676, 0.0
  %v709 = vmax.f32 %v677, 0.0
  %v710 = vmax.f32 %v678, 0.0
  %v711 = vmax.f32 %v679, 0.0
  %v712 = vmax.f32 %v680, 0.0
  %v713 = vmax.f32 %v681, 0.0
  %v714 = vmax.f32 %v682, 0.0
  %v715 = vmax.f32 %v683, 0.0
  %v716 = vmax.f32 %v684, 0.0
  %v717 = vmax.f32 %v685, 0.0
  %v718 = vmax.f32 %v686, 0.0
  %v719 = vmax.f32 %v687, 0.0
  %v720 = vmax.f32 %v688, 0.0
  %v721 = vmax.f32 %v689, 0.0
  %v722 = vmax.f32 %v690, 0.0
  %v723 = vmax.f32 %v691, 0.0
  %v724 = vmax.f32 %v692, 0.0
  %v725 = vmax.f32 %v693, 0.0
  %v726 = vmax.f32 %v694, 0.0
  %v727 = vmax.f32 %v695, 0.0
  %v728 = vmax.f32 %v696, 0.0
  %v729 = vmax.f32 %v697, 0.0
  %v730 = vmax.f32 %v698, 0.0
  %v731 = vmax.f32 %v699, 0.0
  %v732 = vmax.f32 %v700, 0.0
  %v733 = vmax.f32 %v701, 0.0
  %v734 = vmax.f32 %v702, 0.0
  %v735 = vmax.f32 %v703, 0.0
  %v736 = vmax.f32 %v704, 0.0
  %v737 = vld [vmem:[%s6] sm:$0x1]
  %v738 = vld [vmem:[%s5] sm:$0xff]
  %v739 = vld [vmem:[%s5 + $0x8] sm:$0xff]
  %v740 = vld [vmem:[%s5 + $0x10] sm:$0xff]
  %v741 = vld [vmem:[%s5 + $0x18] sm:$0xff]
  %v742 = vld [vmem:[%s5 + $0x20] sm:$0xff]
  %v743 = vld [vmem:[%s5 + $0x28] sm:$0xff]
  %v744 = vld [vmem:[%s5 + $0x30] sm:$0xff]
  %v745 = vld [vmem:[%s5 + $0x38] sm:$0xff]
  %v746 = vld [vmem:[%s5 + $0x40] sm:$0xff]
  %v747 = vld [vmem:[%s5 + $0x48] sm:$0xff]
  %v748 = vld [vmem:[%s5 + $0x50] sm:$0xff]
  %v749 = vld [vmem:[%s5 + $0x58] sm:$0xff]
  %v750 = vld [vmem:[%s5 + $0x60] sm:$0xff]
  %v751 = vld [vmem:[%s5 + $0x68] sm:$0xff]
  %v752 = vld [vmem:[%s5 + $0x70] sm:$0xff]
  %v753 = vld [vmem:[%s5 + $0x78] sm:$0xff]
  %754 = vmatprep.subr.mxu0 0.0
  %755 = vmatpush1.msra.mxu0 %v738
  %756 = vmatprep.subr.mxu0 0.0
  %757 = vmatpush1.msra.mxu0 %v739
  %758 = vmatprep.subr.mxu0 0.0
  %759 = vmatpush1.msra.mxu0 %v740
  %760 = vmatprep.subr.mxu0 0.0
  %761 = vmatpush1.msra.mxu0 %v741
  %762 = vmatprep.subr.mxu0 0.0
  %763 = vmatpush1.msra.mxu0 %v742
  %764 = vmatprep.subr.mxu0 0.0
  %765 = vmatpush1.msra.mxu0 %v743
  %766 = vmatprep.subr.mxu0 0.0
  %767 = vmatpush1.msra.mxu0 %v744
  %768 = vmatprep.subr.mxu0 0.0
  %769 = vmatpush1.msra.mxu0 %v745
  %770 = vmatprep.subr.mxu0 0.0
  %771 = vmatpush1.msra.mxu0 %v746
  %772 = vmatprep.subr.mxu0 0.0
  %773 = vmatpush1.msra.mxu0 %v747
  %774 = vmatprep.subr.mxu0 0.0
  %775 = vmatpush1.msra.mxu0 %v748
  %776 = vmatprep.subr.mxu0 0.0
  %777 = vmatpush1.msra.mxu0 %v749
  %778 = vmatprep.subr.mxu0 0.0
  %779 = vmatpush1.msra.mxu0 %v750
  %780 = vmatprep.subr.mxu0 0.0
  %781 = vmatpush1.msra.mxu0 %v751
  %782 = vmatprep.subr.mxu0 0.0
  %783 = vmatpush1.msra.mxu0 %v752
  %784 = vmatprep.subr.mxu0 0.0
  %785 = vmatpush1.msra.mxu0 %v753
  %786 = vmatprep.subr.mxu0 0.0
  %787 = vmatpush1.msra.mxu0 0.0
  %788 = vmatprep.subr.mxu0 0.0
  %789 = vmatpush1.msra.mxu0 0.0
  %790 = vmatprep.subr.mxu0 0.0
  %791 = vmatpush1.msra.mxu0 0.0
  %792 = vmatprep.subr.mxu0 0.0
  %793 = vmatpush1.msra.mxu0 0.0
  %794 = vmatprep.subr.mxu0 0.0
  %795 = vmatpush1.msra.mxu0 0.0
  %796 = vmatprep.subr.mxu0 0.0
  %797 = vmatpush1.msra.mxu0 0.0
  %798 = vmatprep.subr.mxu0 0.0
  %799 = vmatpush1.msra.mxu0 0.0
  %800 = vmatprep.subr.mxu0 0.0
  %801 = vmatpush1.msra.mxu0 0.0
  %802 = vmatprep.subr.mxu0 0.0
  %803 = vmatpush1.msra.mxu0 0.0
  %804 = vmatprep.subr.mxu0 0.0
  %805 = vmatpush1.msra.mxu0 0.0
  %806 = vmatprep.subr.mxu0 0.0
  %807 = vmatpush1.msra.mxu0 0.0
  %808 = vmatprep.subr.mxu0 0.0
  %809 = vmatpush1.msra.mxu0 0.0
  %810 = vmatprep.subr.mxu0 0.0
  %811 = vmatpush1.msra.mxu0 0.0
  %812 = vmatprep.subr.mxu0 0.0
  %813 = vmatpush1.msra.mxu0 0.0
  %814 = vmatprep.subr.mxu0 0.0
  %815 = vmatpush1.msra.mxu0 0.0
  %816 = vmatprep.subr.mxu0 0.0
  %817 = vmatpush1.msra.mxu0 0.0
  %818 = vmatprep.mubr.f32.mxu0 0.0
  %819 = vmatmul.mubr.f32.gmra.mrb[0].mxu0 %v705
  %v820 = vpop.f32.mrb[0].mxu0
  %v821 = vadd.f32 0.0, %v820
  %v822 = vpop.f32.mrb[0].mxu0
  %823 = vmatprep.mubr.f32.mxu0 0.0
  %824 = vmatmul.mubr.f32.gmra.mrb[0].mxu0 %v706
  %v825 = vpop.f32.mrb[0].mxu0
  %v826 = vadd.f32 0.0, %v825
  %v827 = vpop.f32.mrb[0].mxu0
  %828 = vmatprep.mubr.f32.mxu0 0.0
  %829 = vmatmul.mubr.f32.gmra.mrb[0].mxu0 %v707
  %v830 = vpop.f32.mrb[0].mxu0
  %v831 = vadd.f32 0.0, %v830
  %v832 = vpop.f32.mrb[0].mxu0
  %833 = vmatprep.mubr.f32.mxu0 0.0
  %834 = vmatmul.mubr.f32.gmra.mrb[0].mxu0 %v708
  %v835 = vpop.f32.mrb[0].mxu0
  %v836 = vadd.f32 0.0, %v835
  %v837 = vpop.f32.mrb[0].mxu0
  %838 = vmatprep.mubr.f32.mxu0 0.0
  %839 = vmatmul.mubr.f32.gmra.mrb[0].mxu0 %v709
  %v840 = vpop.f32.mrb[0].mxu0
  %v841 = vadd.f32 0.0, %v840
  %v842 = vpop.f32.mrb[0].mxu0
  %843 = vmatprep.mubr.f32.mxu0 0.0
  %844 = vmatmul.mubr.f32.gmra.mrb[0].mxu0 %v710
  %v845 = vpop.f32.mrb[0].mxu0
  %v846 = vadd.f32 0.0, %v845
  %v847 = vpop.f32.mrb[0].mxu0
  %848 = vmatprep.mubr.f32.mxu0 0.0
  %849 = vmatmul.mubr.f32.gmra.mrb[0].mxu0 %v711
  %v850 = vpop.f32.mrb[0].mxu0
  %v851 = vadd.f32 0.0, %v850
  %v852 = vpop.f32.mrb[0].mxu0
  %853 = vmatprep.mubr.f32.mxu0 0.0
  %854 = vmatmul.mubr.f32.gmra.mrb[0].mxu0 %v712
  %v855 = vpop.f32.mrb[0].mxu0
  %v856 = vadd.f32 0.0, %v855
  %v857 = vpop.f32.mrb[0].mxu0
  %858 = vmatprep.mubr.f32.mxu0 0.0
  %859 = vmatmul.mubr.f32.gmra.mrb[0].mxu0 %v713
  %v860 = vpop.f32.mrb[0].mxu0
  %v861 = vadd.f32 0.0, %v860
  %v862 = vpop.f32.mrb[0].mxu0
  %863 = vmatprep.mubr.f32.mxu0 0.0
  %864 = vmatmul.mubr.f32.gmra.mrb[0].mxu0 %v714
  %v865 = vpop.f32.mrb[0].mxu0
  %v866 = vadd.f32 0.0, %v865
  %v867 = vpop.f32.mrb[0].mxu0
  %868 = vmatprep.mubr.f32.mxu0 0.0
  %869 = vmatmul.mubr.f32.gmra.mrb[0].mxu0 %v715
  %v870 = vpop.f32.mrb[0].mxu0
  %v871 = vadd.f32 0.0, %v870
  %v872 = vpop.f32.mrb[0].mxu0
  %873 = vmatprep.mubr.f32.mxu0 0.0
  %874 = vmatmul.mubr.f32.gmra.mrb[0].mxu0 %v716
  %v875 = vpop.f32.mrb[0].mxu0
  %v876 = vadd.f32 0.0, %v875
  %v877 = vpop.f32.mrb[0].mxu0
  %878 = vmatprep.mubr.f32.mxu0 0.0
  %879 = vmatmul.mubr.f32.gmra.mrb[0].mxu0 %v717
  %v880 = vpop.f32.mrb[0].mxu0
  %v881 = vadd.f32 0.0, %v880
  %v882 = vpop.f32.mrb[0].mxu0
  %883 = vmatprep.mubr.f32.mxu0 0.0
  %884 = vmatmul.mubr.f32.gmra.mrb[0].mxu0 %v718
  %v885 = vpop.f32.mrb[0].mxu0
  %v886 = vadd.f32 0.0, %v885
  %v887 = vpop.f32.mrb[0].mxu0
  %888 = vmatprep.mubr.f32.mxu0 0.0
  %889 = vmatmul.mubr.f32.gmra.mrb[0].mxu0 %v719
  %v890 = vpop.f32.mrb[0].mxu0
  %v891 = vadd.f32 0.0, %v890
  %v892 = vpop.f32.mrb[0].mxu0
  %893 = vmatprep.mubr.f32.mxu0 0.0
  %894 = vmatmul.mubr.f32.gmra.mrb[0].mxu0 %v720
  %v895 = vpop.f32.mrb[0].mxu0
  %v896 = vadd.f32 0.0, %v895
  %v897 = vpop.f32.mrb[0].mxu0
  %898 = vmatprep.mubr.f32.mxu0 0.0
  %899 = vmatmul.mubr.f32.gmra.mrb[0].mxu0 %v721
  %v900 = vpop.f32.mrb[0].mxu0
  %v901 = vadd.f32 0.0, %v900
  %v902 = vpop.f32.mrb[0].mxu0
  %903 = vmatprep.mubr.f32.mxu0 0.0
  %904 = vmatmul.mubr.f32.gmra.mrb[0].mxu0 %v722
  %v905 = vpop.f32.mrb[0].mxu0
  %v906 = vadd.f32 0.0, %v905
  %v907 = vpop.f32.mrb[0].mxu0
  %908 = vmatprep.mubr.f32.mxu0 0.0
  %909 = vmatmul.mubr.f32.gmra.mrb[0].mxu0 %v723
  %v910 = vpop.f32.mrb[0].mxu0
  %v911 = vadd.f32 0.0, %v910
  %v912 = vpop.f32.mrb[0].mxu0
  %913 = vmatprep.mubr.f32.mxu0 0.0
  %914 = vmatmul.mubr.f32.gmra.mrb[0].mxu0 %v724
  %v915 = vpop.f32.mrb[0].mxu0
  %v916 = vadd.f32 0.0, %v915
  %v917 = vpop.f32.mrb[0].mxu0
  %918 = vmatprep.mubr.f32.mxu0 0.0
  %919 = vmatmul.mubr.f32.gmra.mrb[0].mxu0 %v725
  %v920 = vpop.f32.mrb[0].mxu0
  %v921 = vadd.f32 0.0, %v920
  %v922 = vpop.f32.mrb[0].mxu0
  %923 = vmatprep.mubr.f32.mxu0 0.0
  %924 = vmatmul.mubr.f32.gmra.mrb[0].mxu0 %v726
  %v925 = vpop.f32.mrb[0].mxu0
  %v926 = vadd.f32 0.0, %v925
  %v927 = vpop.f32.mrb[0].mxu0
  %928 = vmatprep.mubr.f32.mxu0 0.0
  %929 = vmatmul.mubr.f32.gmra.mrb[0].mxu0 %v727
  %v930 = vpop.f32.mrb[0].mxu0
  %v931 = vadd.f32 0.0, %v930
  %v932 = vpop.f32.mrb[0].mxu0
  %933 = vmatprep.mubr.f32.mxu0 0.0
  %934 = vmatmul.mubr.f32.gmra.mrb[0].mxu0 %v728
  %v935 = vpop.f32.mrb[0].mxu0
  %v936 = vadd.f32 0.0, %v935
  %v937 = vpop.f32.mrb[0].mxu0
  %938 = vmatprep.mubr.f32.mxu0 0.0
  %939 = vmatmul.mubr.f32.gmra.mrb[0].mxu0 %v729
  %v940 = vpop.f32.mrb[0].mxu0
  %v941 = vadd.f32 0.0, %v940
  %v942 = vpop.f32.mrb[0].mxu0
  %943 = vmatprep.mubr.f32.mxu0 0.0
  %944 = vmatmul.mubr.f32.gmra.mrb[0].mxu0 %v730
  %v945 = vpop.f32.mrb[0].mxu0
  %v946 = vadd.f32 0.0, %v945
  %v947 = vpop.f32.mrb[0].mxu0
  %948 = vmatprep.mubr.f32.mxu0 0.0
  %949 = vmatmul.mubr.f32.gmra.mrb[0].mxu0 %v731
  %v950 = vpop.f32.mrb[0].mxu0
  %v951 = vadd.f32 0.0, %v950
  %v952 = vpop.f32.mrb[0].mxu0
  %953 = vmatprep.mubr.f32.mxu0 0.0
  %954 = vmatmul.mubr.f32.gmra.mrb[0].mxu0 %v732
  %v955 = vpop.f32.mrb[0].mxu0
  %v956 = vadd.f32 0.0, %v955
  %v957 = vpop.f32.mrb[0].mxu0
  %958 = vmatprep.mubr.f32.mxu0 0.0
  %959 = vmatmul.mubr.f32.gmra.mrb[0].mxu0 %v733
  %v960 = vpop.f32.mrb[0].mxu0
  %v961 = vadd.f32 0.0, %v960
  %v962 = vpop.f32.mrb[0].mxu0
  %963 = vmatprep.mubr.f32.mxu0 0.0
  %964 = vmatmul.mubr.f32.gmra.mrb[0].mxu0 %v734
  %v965 = vpop.f32.mrb[0].mxu0
  %v966 = vadd.f32 0.0, %v965
  %v967 = vpop.f32.mrb[0].mxu0
  %968 = vmatprep.mubr.f32.mxu0 0.0
  %969 = vmatmul.mubr.f32.gmra.mrb[0].mxu0 %v735
  %v970 = vpop.f32.mrb[0].mxu0
  %v971 = vadd.f32 0.0, %v970
  %v972 = vpop.f32.mrb[0].mxu0
  %973 = vmatprep.mubr.f32.mxu0 0.0
  %974 = vmatmul.mubr.f32.gmra.mrb[0].mxu0 %v736
  %v975 = vpop.f32.mrb[0].mxu0
  %v976 = vadd.f32 0.0, %v975
  %v977 = vpop.f32.mrb[0].mxu0
  %978 = vdwg.mxu0
  %v980 = vlaneseq
  %v981 = vshrl.u32 %v980, 7
  %v982 = vsub.s32 0, %v981
  %v983 = vrot.slane %v737, %v982
  %v985 = vadd.f32 %v983, %v821
  %v986 = vadd.f32 %v983, %v826
  %v987 = vadd.f32 %v983, %v831
  %v988 = vadd.f32 %v983, %v836
  %v989 = vadd.f32 %v983, %v841
  %v990 = vadd.f32 %v983, %v846
  %v991 = vadd.f32 %v983, %v851
  %v992 = vadd.f32 %v983, %v856
  %v993 = vadd.f32 %v983, %v861
  %v994 = vadd.f32 %v983, %v866
  %v995 = vadd.f32 %v983, %v871
  %v996 = vadd.f32 %v983, %v876
  %v997 = vadd.f32 %v983, %v881
  %v998 = vadd.f32 %v983, %v886
  %v999 = vadd.f32 %v983, %v891
  %v1000 = vadd.f32 %v983, %v896
  %v1001 = vadd.f32 %v983, %v901
  %v1002 = vadd.f32 %v983, %v906
  %v1003 = vadd.f32 %v983, %v911
  %v1004 = vadd.f32 %v983, %v916
  %v1005 = vadd.f32 %v983, %v921
  %v1006 = vadd.f32 %v983, %v926
  %v1007 = vadd.f32 %v983, %v931
  %v1008 = vadd.f32 %v983, %v936
  %v1009 = vadd.f32 %v983, %v941
  %v1010 = vadd.f32 %v983, %v946
  %v1011 = vadd.f32 %v983, %v951
  %v1012 = vadd.f32 %v983, %v956
  %v1013 = vadd.f32 %v983, %v961
  %v1014 = vadd.f32 %v983, %v966
  %v1015 = vadd.f32 %v983, %v971
  %v1016 = vadd.f32 %v983, %v976
  %vm1017 = vcmask 31744
  %1018 = vst.msk [vmem:[%s7] sm:$0xff] %vm1017, %v985
  %1019 = vst.msk [vmem:[%s7 + $0x8] sm:$0xff] %vm1017, %v986
  %1020 = vst.msk [vmem:[%s7 + $0x10] sm:$0xff] %vm1017, %v987
  %1021 = vst.msk [vmem:[%s7 + $0x18] sm:$0xff] %vm1017, %v988
  %1022 = vst.msk [vmem:[%s7 + $0x20] sm:$0xff] %vm1017, %v989
  %1023 = vst.msk [vmem:[%s7 + $0x28] sm:$0xff] %vm1017, %v990
  %1024 = vst.msk [vmem:[%s7 + $0x30] sm:$0xff] %vm1017, %v991
  %1025 = vst.msk [vmem:[%s7 + $0x38] sm:$0xff] %vm1017, %v992
  %1026 = vst.msk [vmem:[%s7 + $0x40] sm:$0xff] %vm1017, %v993
  %1027 = vst.msk [vmem:[%s7 + $0x48] sm:$0xff] %vm1017, %v994
  %1028 = vst.msk [vmem:[%s7 + $0x50] sm:$0xff] %vm1017, %v995
  %1029 = vst.msk [vmem:[%s7 + $0x58] sm:$0xff] %vm1017, %v996
  %1030 = vst.msk [vmem:[%s7 + $0x60] sm:$0xff] %vm1017, %v997
  %1031 = vst.msk [vmem:[%s7 + $0x68] sm:$0xff] %vm1017, %v998
  %1032 = vst.msk [vmem:[%s7 + $0x70] sm:$0xff] %vm1017, %v999
  %1033 = vst.msk [vmem:[%s7 + $0x78] sm:$0xff] %vm1017, %v1000
  %1034 = vst.msk [vmem:[%s7 + $0x80] sm:$0xff] %vm1017, %v1001
  %1035 = vst.msk [vmem:[%s7 + $0x88] sm:$0xff] %vm1017, %v1002
  %1036 = vst.msk [vmem:[%s7 + $0x90] sm:$0xff] %vm1017, %v1003
  %1037 = vst.msk [vmem:[%s7 + $0x98] sm:$0xff] %vm1017, %v1004
  %1038 = vst.msk [vmem:[%s7 + $0xa0] sm:$0xff] %vm1017, %v1005
  %1039 = vst.msk [vmem:[%s7 + $0xa8] sm:$0xff] %vm1017, %v1006
  %1040 = vst.msk [vmem:[%s7 + $0xb0] sm:$0xff] %vm1017, %v1007
  %1041 = vst.msk [vmem:[%s7 + $0xb8] sm:$0xff] %vm1017, %v1008
  %1042 = vst.msk [vmem:[%s7 + $0xc0] sm:$0xff] %vm1017, %v1009
  %1043 = vst.msk [vmem:[%s7 + $0xc8] sm:$0xff] %vm1017, %v1010
  %1044 = vst.msk [vmem:[%s7 + $0xd0] sm:$0xff] %vm1017, %v1011
  %1045 = vst.msk [vmem:[%s7 + $0xd8] sm:$0xff] %vm1017, %v1012
  %1046 = vst.msk [vmem:[%s7 + $0xe0] sm:$0xff] %vm1017, %v1013
  %1047 = vst.msk [vmem:[%s7 + $0xe8] sm:$0xff] %vm1017, %v1014
  %1048 = vst.msk [vmem:[%s7 + $0xf0] sm:$0xff] %vm1017, %v1015
  %1049 = vst.msk [vmem:[%s7 + $0xf8] sm:$0xff] %vm1017, %v1016
  // Predicated region
  $region30: #{tpu_custom_call.1} parent=0 // pred_check
    _
  $region31: #{tpu_custom_call.1} parent=0 // pred_check_branch
    %1051 = sbr.rel (0) target = $region33
  $region32: #{tpu_custom_call.1} parent=0 // pred_region
    _
  $region33: #{tpu_custom_call.1} parent=0 // pred_fallthru
    _
  // Predicated region
  $region34: #{tpu_custom_call.1} parent=0 // pred_check
    _
  $region35: #{tpu_custom_call.1} parent=0 // pred_check_branch
    %1053 = sbr.rel (0) target = $region37
  $region36: #{tpu_custom_call.1} parent=0 // pred_region
    _
  $region37: #{tpu_custom_call.1} parent=0 // pred_fallthru
    _

</llo_original>
